<compile_context>
chip_gen: v6e
topology: v6e:2x2x1
jax: 0.10.0
libtpu: 0.0.40
codegen_flags: <defaults>
</compile_context>

<pallas_src>
import functools

import jax
import jax.numpy as jnp
from jax import lax
from jax.experimental import pallas as pl
from jax.experimental.pallas import tpu as pltpu


# ----------------------------------------------------------------------------
# Generation-aware knobs (v5e / v6e / v7x) — best-effort detection, safe defaults.
# ----------------------------------------------------------------------------
def _device_kind():
    try:
        return jax.devices()[0].device_kind.lower()
    except Exception:
        return ""


_KIND = _device_kind()
_NUM_TC = 2 if "v7" in _KIND else 1           # v7x: 2 TensorCores per chip
_PREFER_TN256 = "v5" not in _KIND             # v5e MXU is 128-wide: tn=256 wastes VMEM
_A_TILE_BYTES = 4 << 20                       # target A-tile footprint (bf16)
_VMEM_LIMIT = (48 << 20) if _NUM_TC > 1 else (64 << 20)   # v7x: 64 MiB VMEM / TC


def _round_up(x, m):
    return ((x + m - 1) // m) * m


# ----------------------------------------------------------------------------
# Pallas kernels: single-pass-K GEMM with fused bias / ReLU / residual epilogue
# ----------------------------------------------------------------------------
def _gemm_kernel(a_ref, w_ref, b_ref, o_ref, *, relu):
    acc = jnp.dot(a_ref[...], w_ref[...], preferred_element_type=jnp.float32)
    acc = acc + b_ref[...]
    if relu:
        acc = jnp.maximum(acc, 0.0)
    o_ref[...] = acc.astype(o_ref.dtype)


def _gemm_residual_kernel(a_ref, w_ref, b_ref, r_ref, o_ref, *, relu):
    acc = jnp.dot(a_ref[...], w_ref[...], preferred_element_type=jnp.float32)
    acc = acc + b_ref[...] + r_ref[...].astype(jnp.float32)
    if relu:
        acc = jnp.maximum(acc, 0.0)
    o_ref[...] = acc.astype(o_ref.dtype)


def matmul_bias(a, w, bias, *, relu=False, residual=None, out_dtype=jnp.float32):
    """a:[M,K] @ w:[K,Np] + bias:[1,Np] (+ residual, + ReLU) via one Pallas GEMM.

    w / bias are pre-padded so Np is a multiple of 128 (lane-dense stores).
    K is a single full block (every layer's K fits VMEM easily).
    Returns [M, Np] in out_dtype (padded rows stripped, padded cols kept).
    """
    M, K = a.shape
    K2, Np = w.shape
    assert K == K2 and Np % 128 == 0, (a.shape, w.shape)
    a = a.astype(jnp.bfloat16)

    # Adaptive tiles: as few grid steps as possible (~0.35us per-step overhead),
    # A-tile capped at ~4 MiB so double-buffered tiles fit every generation.
    tm_cap = max(8, min(2048, (_A_TILE_BYTES // (K * 2)) // 8 * 8))
    if M <= tm_cap:
        tm = _round_up(M, 8)
    else:
        tm = _round_up(pl.cdiv(M, pl.cdiv(M, tm_cap)), 8)
    tn = 256 if (Np % 256 == 0 and _PREFER_TN256) else 128
    Mp = _round_up(M, tm)

    # v7x: keep >=2 parallel tiles so both TensorCores get work — but only by
    # splitting M when M is large (splitting tiny-M weight-DMA-bound layers
    # would merely duplicate the weight DMA on both cores).
    if _NUM_TC > 1 and (Mp // tm) * (Np // tn) < _NUM_TC and Mp >= 256:
        tm = _round_up(pl.cdiv(Mp, _NUM_TC), 8)
        Mp = _round_up(M, tm)

    if Mp != M:
        a = jnp.pad(a, ((0, Mp - M), (0, 0)))

    grid = (Mp // tm, Np // tn)
    in_specs = [
        pl.BlockSpec((tm, K), lambda i, j: (i, 0)),    # full-K block: no k axis
        pl.BlockSpec((K, tn), lambda i, j: (0, j)),
        pl.BlockSpec((1, tn), lambda i, j: (0, j)),
    ]
    args = [a, w, bias]
    bytes_accessed = Mp * K * 2 + K * Np * 2 + Np * 4
    bytes_accessed += Mp * Np * jnp.dtype(out_dtype).itemsize
    if residual is not None:
        r = residual
        pad_m, pad_n = Mp - r.shape[0], Np - r.shape[1]
        if pad_m or pad_n:           # never taken in this net (lane-padded acts)
            r = jnp.pad(r, ((0, pad_m), (0, pad_n)))
        in_specs.append(pl.BlockSpec((tm, tn), lambda i, j: (i, j)))
        args.append(r)
        bytes_accessed += r.size * r.dtype.itemsize
        kernel = functools.partial(_gemm_residual_kernel, relu=relu)
    else:
        kernel = functools.partial(_gemm_kernel, relu=relu)

    out = pl.pallas_call(
        kernel,
        out_shape=jax.ShapeDtypeStruct((Mp, Np), out_dtype),
        grid_spec=pltpu.PrefetchScalarGridSpec(
            num_scalar_prefetch=0,
            grid=grid,
            in_specs=in_specs,
            out_specs=pl.BlockSpec((tm, tn), lambda i, j: (i, j)),
        ),
        compiler_params=pltpu.CompilerParams(
            dimension_semantics=("parallel", "parallel"),
            vmem_limit_bytes=_VMEM_LIMIT),
        cost_estimate=pl.CostEstimate(
            flops=2 * Mp * K * Np, transcendentals=0,
            bytes_accessed=int(bytes_accessed)),
    )(*args)
    return out[:M] if Mp != M else out


# ----------------------------------------------------------------------------
# Conv (NHWC) via patch extraction + Pallas GEMM (channels stay lane-padded)
# ----------------------------------------------------------------------------
def conv2d(x, layer, kh, kw, *, stride=1, pad=(0, 0), relu=False,
           residual=None, out_dtype=jnp.bfloat16):
    """x:[N,H,W,Cin_pad] -> [N,Ho,Wo,Np].  `layer` holds GEMM-layout weights."""
    n = x.shape[0]
    x = x.astype(jnp.bfloat16)
    if kh == 1 and kw == 1 and pad == (0, 0):
        patches = x[:, ::stride, ::stride, :] if stride > 1 else x
    else:
        # K ordered (Cin, kh, kw) — matches the pre-reshaped weights.
        patches = lax.conv_general_dilated_patches(
            x, (kh, kw), (stride, stride),
            ((pad[0], pad[0]), (pad[1], pad[1])),
            dimension_numbers=("NHWC", "HWIO", "NHWC"))
    ho, wo = patches.shape[1], patches.shape[2]
    a = patches.reshape(n * ho * wo, -1)
    assert a.shape[1] == layer["w"].shape[0], (a.shape, layer["w"].shape)
    res = residual.reshape(n * ho * wo, -1) if residual is not None else None
    out = matmul_bias(a, layer["w"], layer["b"], relu=relu, residual=res,
                      out_dtype=out_dtype)
    return out.reshape(n, ho, wo, layer["np"])


# ----------------------------------------------------------------------------
# Fused ConvTranspose2d(k=3, s=2, p=0): ONE GEMM per layer (4 sub-pixel phases
# packed along N), assembled with a single depth-to-space reshape.
# ----------------------------------------------------------------------------
def conv_transpose2d(x, layer, *, relu=False, out_dtype=jnp.bfloat16):
    """x:[N,H,W,Cin_pad] -> [N, 2H+1, 2W+1, Np] (channels stay lane-padded)."""
    n, h, w, c = x.shape
    x = x.astype(jnp.bfloat16)
    # Uniform 2x2 patches, pad (1,1): one im2col for all four phases.
    patches = lax.conv_general_dilated_patches(
        x, (2, 2), (1, 1), ((1, 1), (1, 1)),
        dimension_numbers=("NHWC", "HWIO", "NHWC"))     # [N, H+1, W+1, C*4]
    ho, wo = h + 1, w + 1
    a = patches.reshape(n * ho * wo, c * 4)
    assert a.shape[1] == layer["w"].shape[0], (a.shape, layer["w"].shape)
    out = matmul_bias(a, layer["w"], layer["b"], relu=relu, out_dtype=out_dtype)
    np_ = layer["np"]
    # Depth-to-space: [M, 4*Np] -> [N, 2(H+1), 2(W+1), Np], then crop.
    y = out.reshape(n, ho, wo, 2, 2, np_)
    y = jnp.transpose(y, (0, 1, 3, 2, 4, 5)).reshape(n, 2 * ho, 2 * wo, np_)
    return y[:, :2 * h + 1, :2 * w + 1, :]


# ----------------------------------------------------------------------------
# Weight preparation (ONCE at init: BN folding, GEMM layout, padding, bf16)
# ----------------------------------------------------------------------------
def fold_bn(w, gamma, beta, mean, var, eps=1e-5):
    """Fold eval-mode BatchNorm into conv weight + bias (exact)."""
    scale = gamma / jnp.sqrt(var + eps)
    return w * scale[:, None, None, None], beta - mean * scale


def _prep_conv(w, bias, cin_pad=None):
    """w:[Cout,Cin,kh,kw] -> {"w":[K,Np] bf16, "b":[1,Np] f32}.

    Cin is zero-padded to cin_pad (the lane-padded channel count of the
    producing layer) and Cout is zero-padded to a multiple of 128.
    """
    cout, cin, kh, kw = w.shape
    if cin_pad and cin_pad > cin:
        w = jnp.pad(w, ((0, 0), (0, cin_pad - cin), (0, 0), (0, 0)))
    k = w.shape[1] * kh * kw
    np_ = _round_up(cout, 128)
    wg = jnp.pad(w.reshape(cout, k).T, ((0, 0), (0, np_ - cout)))
    bg = jnp.pad(bias, (0, np_ - cout)).reshape(1, np_)
    return {"w": wg.astype(jnp.bfloat16), "b": bg.astype(jnp.float32),
            "cout": cout, "np": np_}


def _parity_slice(w, axis, parity):
    """2 taps of the 3-tap transpose-conv kernel for one output parity.

    even rows: out[2m] = x[m-1]*w[2] + x[m]*w[0]  -> taps [w2, w0]
    odd  rows: out[2m+1] = x[m]*w[1]              -> taps [0,  w1]
    """
    if parity == 0:
        return jnp.take(w, jnp.array([2, 0]), axis=axis)
    zero = jnp.zeros_like(jnp.take(w, jnp.array([0]), axis=axis))
    return jnp.concatenate([zero, jnp.take(w, jnp.array([1]), axis=axis)], axis=axis)


def _prep_deconv(w_t, bias, cin_pad=None):
    """ConvTranspose2d weight [Cin,Cout,3,3] -> fused 4-phase GEMM weights.

    Each phase becomes a dense 2x2 cross-correlation (zero taps where needed);
    the four [K, Np] blocks are concatenated along N -> [K = cin_pad*4, 4*Np].
    """
    cin, cout = w_t.shape[0], w_t.shape[1]
    cin_pad = cin_pad or cin
    w_oi = jnp.transpose(w_t, (1, 0, 2, 3))              # [Cout, Cin, 3, 3]
    np_ = _round_up(cout, 128)
    cols, bcols = [], []
    for ph in (0, 1):                                     # output-row parity
        wh = _parity_slice(w_oi, 2, ph)
        for pw in (0, 1):                                 # output-col parity
            sub = _parity_slice(wh, 3, pw)                # [Cout, Cin, 2, 2]
            if cin_pad > cin:
                sub = jnp.pad(sub, ((0, 0), (0, cin_pad - cin), (0, 0), (0, 0)))
            k = cin_pad * 4
            cols.append(jnp.pad(sub.reshape(cout, k).T, ((0, 0), (0, np_ - cout))))
            bcols.append(jnp.pad(bias, (0, np_ - cout)))
    w_all = jnp.concatenate(cols, axis=1).astype(jnp.bfloat16)   # [K, 4*Np]
    b_all = jnp.concatenate(bcols).reshape(1, 4 * np_).astype(jnp.float32)
    return {"w": w_all, "b": b_all, "cout": cout, "np": np_}


# ----------------------------------------------------------------------------
# Parameter construction (deterministic, synthetic — no checkpoint load)
# ----------------------------------------------------------------------------
def _conv_w(key, cout, cin, k):
    fan_in = cin * k * k
    return jax.random.normal(key, (cout, cin, k, k), jnp.float32) / jnp.sqrt(fan_in)


def _bn(c):
    i = jnp.arange(c, dtype=jnp.float32)
    return dict(gamma=1.0 + 0.05 * jnp.cos(i),
                beta=0.02 * jnp.sin(i),
                mean=0.01 * jnp.cos(0.5 * i),
                var=1.0 + 0.05 * jnp.sin(0.3 * i) ** 2)


def init_encoder_params(key):
    ks = iter(jax.random.split(key, 64))
    p = {"conv1": _prep_conv(*fold_bn(_conv_w(next(ks), 64, 3, 7), **_bn(64)))}
    prev_np = 128                                    # conv1 output lane-padded
    cfg = [(64, 64, 1), (64, 128, 2), (128, 256, 2), (256, 512, 2)]
    for li, (cin, cout, stride) in enumerate(cfg, start=1):
        out_np = _round_up(cout, 128)
        blocks = []
        for bi in range(2):
            c_in = cin if bi == 0 else cout
            in_np = prev_np if bi == 0 else out_np
            s = stride if bi == 0 else 1
            blk = {
                "conv1": _prep_conv(*fold_bn(_conv_w(next(ks), cout, c_in, 3),
                                             **_bn(cout)), cin_pad=in_np),
                "conv2": _prep_conv(*fold_bn(_conv_w(next(ks), cout, cout, 3),
                                             **_bn(cout)), cin_pad=out_np),
            }
            if bi == 0 and (s != 1 or c_in != cout):
                blk["down"] = _prep_conv(*fold_bn(_conv_w(next(ks), cout, c_in, 1),
                                                  **_bn(cout)), cin_pad=in_np)
            blocks.append(blk)
        p[f"layer{li}"] = blocks
        prev_np = out_np
    fc_w = jax.random.normal(next(ks), (1000, 512), jnp.float32) / jnp.sqrt(512.0)
    fc_b = 0.01 * jnp.cos(jnp.arange(1000, dtype=jnp.float32))
    p["fc"] = _prep_conv(fc_w.reshape(1000, 512, 1, 1), fc_b)
    return p


def init_decoder_params(key):
    ks = jax.random.split(key, 4)
    shapes = [(512, 256), (256, 128), (128, 32), (32, 3)]
    layers, prev_np = [], 512                        # encoder feat: 512 channels
    for (ci, co), k in zip(shapes, ks):
        w = jax.random.normal(k, (ci, co, 3, 3), jnp.float32) / jnp.sqrt(ci * 9.0)
        b = 0.01 * jnp.cos(jnp.arange(co, dtype=jnp.float32))
        layers.append(_prep_deconv(w, b, cin_pad=prev_np))
        prev_np = _round_up(co, 128)
    return layers


# ----------------------------------------------------------------------------
# Model forward passes (NHWC activations, bf16 + lane-padded channels between layers)
# ----------------------------------------------------------------------------
def basic_block(x, p, stride):
    out = conv2d(x, p["conv1"], 3, 3, stride=stride, pad=(1, 1), relu=True)
    if "down" in p:
        identity = conv2d(x, p["down"], 1, 1, stride=stride, pad=(0, 0))
    else:
        identity = x
    # conv2 + folded BN + residual add + ReLU, all fused in the GEMM epilogue.
    return conv2d(out, p["conv2"], 3, 3, stride=1, pad=(1, 1),
                  residual=identity, relu=True)


def sencoder_forward(p, x):
    """torchvision resnet18 forward (eval mode, synthetic weights). x: NHWC."""
    x = conv2d(x, p["conv1"], 7, 7, stride=2, pad=(3, 3), relu=True)
    # maxpool 3x3 / stride 2 / pad 1 — tiny reduction, kept as JAX glue.
    x = lax.reduce_window(x, jnp.array(-jnp.inf, x.dtype), lax.max,
                          (1, 3, 3, 1), (1, 2, 2, 1),
                          ((0, 0), (1, 1), (1, 1), (0, 0)))
    for name, stride in (("layer1", 1), ("layer2", 2), ("layer3", 2), ("layer4", 2)):
        b0, b1 = p[name]
        x = basic_block(x, b0, stride)
        x = basic_block(x, b1, 1)
    feat = x                                                # [N, H', W', 512]
    pooled = jnp.mean(x.astype(jnp.float32), axis=(1, 2))   # adaptive avg pool (glue)
    logits = matmul_bias(pooled, p["fc"]["w"], p["fc"]["b"],
                         out_dtype=jnp.float32)[:, :p["fc"]["cout"]]
    return logits, feat


def sdecoder_forward(p, x):
    # TODO(synk): SDecoder declares layers but no forward(); we chain
    # relu(convT) for the first three layers and a plain convT for the last.
    x = conv_transpose2d(x, p[0], relu=True)
    x = conv_transpose2d(x, p[1], relu=True)
    x = conv_transpose2d(x, p[2], relu=True)
    x = conv_transpose2d(x, p[3], relu=False, out_dtype=jnp.float32)
    return x[..., :p[3]["cout"]]            # strip lane padding at the boundary


def vae_forward(params, x_nchw):
    x = jnp.transpose(x_nchw, (0, 2, 3, 1))            # NCHW -> NHWC (boundary only)
    logits, feat = sencoder_forward(params["encoder"], x)
    recon = sdecoder_forward(params["decoder"], feat)
    return logits, jnp.transpose(recon, (0, 3, 1, 2))  # back to NCHW


# ----------------------------------------------------------------------------
# Parity self-tests (per review): im2col/GEMM layout and sub-pixel convT math.
# ----------------------------------------------------------------------------
def _self_test_conv():
    k1, k2, k3 = jax.random.split(jax.random.PRNGKey(42), 3)
    x = jax.random.normal(k1, (1, 9, 9, 5), jnp.float32)
    w = jax.random.normal(k2, (7, 5, 3, 3), jnp.float32) * 0.2
    b = jax.random.normal(k3, (7,), jnp.float32) * 0.1
    got = conv2d(x, _prep_conv(w, b), 3, 3, stride=2, pad=(1, 1),
                 out_dtype=jnp.float32)[..., :7]
    ref = lax.conv_general_dilated(
        x.astype(jnp.bfloat16),
        jnp.transpose(w, (2, 3, 1, 0)).astype(jnp.bfloat16),
        (2, 2), ((1, 1), (1, 1)),
        dimension_numbers=("NHWC", "HWIO", "NHWC"),
        preferred_element_type=jnp.float32) + b
    assert got.shape == ref.shape, (got.shape, ref.shape)
    assert jnp.max(jnp.abs(got - ref)) < 5e-2, "conv2d parity check failed"


def _self_test_deconv():
    k1, k2, k3 = jax.random.split(jax.random.PRNGKey(43), 3)
    cin, cout = 6, 5
    x = jax.random.normal(k1, (1, 4, 4, cin), jnp.float32)
    w = jax.random.normal(k2, (cin, cout, 3, 3), jnp.float32) * 0.2
    b = jax.random.normal(k3, (cout,), jnp.float32) * 0.1
    got = conv_transpose2d(x, _prep_deconv(w, b), relu=False,
                           out_dtype=jnp.float32)[..., :cout]
    # ConvTranspose2d(k=3,s=2,p=0) == input dilation 2, pad 2, flipped kernel.
    w_hwio = jnp.transpose(w[:, :, ::-1, ::-1], (2, 3, 0, 1)).astype(jnp.bfloat16)
    ref = lax.conv_general_dilated(
        x.astype(jnp.bfloat16), w_hwio, (1, 1), ((2, 2), (2, 2)),
        lhs_dilation=(2, 2), dimension_numbers=("NHWC", "HWIO", "NHWC"),
        preferred_element_type=jnp.float32) + b
    assert got.shape == ref.shape == (1, 9, 9, cout), (got.shape, ref.shape)
    assert jnp.max(jnp.abs(got - ref)) < 5e-2, "conv_transpose2d parity check failed"


# ----------------------------------------------------------------------------
if __name__ == "__main__":
    _self_test_conv()
    _self_test_deconv()

    IMAGE_SIZE = 64
    BATCH = 2

    key = jax.random.PRNGKey(0)
    k_x, k_enc, k_dec = jax.random.split(key, 3)
    x = jax.random.normal(k_x, (BATCH, 3, IMAGE_SIZE, IMAGE_SIZE), jnp.float32)
    params = {"encoder": init_encoder_params(k_enc),
              "decoder": init_decoder_params(k_dec)}

    # Close over params so static layout metadata (Python ints) is not traced.
    fwd = jax.jit(lambda inp: vae_forward(params, inp))
    logits, recon = fwd(x)
    jax.block_until_ready((logits, recon))

    assert logits.shape == (BATCH, 1000), logits.shape
    assert recon.shape == (BATCH, 3, 47, 47), recon.shape
    assert jnp.all(jnp.isfinite(logits)) and jnp.all(jnp.isfinite(recon))
    print("KERNEL_OK")
</pallas_src>

<mosaic_0001>
module attributes {stable_mosaic.version = 11 : i64} {
  func.func @_gemm_kernel(%arg0: i32, %arg1: i32, %arg2: memref<32x45xbf16, #tpu.memory_space<vmem>>, %arg3: memref<45x128xbf16, #tpu.memory_space<vmem>>, %arg4: memref<1x128xf32, #tpu.memory_space<vmem>>, %arg5: memref<32x128xf32, #tpu.memory_space<vmem>>) attributes {dimension_semantics = [#tpu.dimension_semantics<parallel>, #tpu.dimension_semantics<parallel>], iteration_bounds = array<i64: 1, 1>, scalar_prefetch = 0 : i64, scratch_operands = 0 : i64, tpu.core_type = #tpu.core_type<tc>, window_params = [{transform_indices = @transform_0, window_bounds = array<i64: 32, 45>}, {transform_indices = @transform_1, window_bounds = array<i64: 45, 128>}, {transform_indices = @transform_2, window_bounds = array<i64: 1, 128>}, {transform_indices = @transform_3, window_bounds = array<i64: 32, 128>}]} {
    %c0 = arith.constant 0 : index
    %c0_0 = arith.constant 0 : index
    %0 = vector.load %arg2[%c0, %c0_0] : memref<32x45xbf16, #tpu.memory_space<vmem>>, vector<32x45xbf16>
    %c0_1 = arith.constant 0 : index
    %c0_2 = arith.constant 0 : index
    %1 = vector.load %arg3[%c0_1, %c0_2] : memref<45x128xbf16, #tpu.memory_space<vmem>>, vector<45x128xbf16>
    %cst = arith.constant dense<0.000000e+00> : vector<32x128xf32>
    %2 = tpu.matmul %0, %1, %cst {dimension_numbers = #tpu.dot_dimension_numbers<[1], [0], [0], [1], [0, 0, 1, 1], [], []>} : vector<32x45xbf16>, vector<45x128xbf16>, vector<32x128xf32> -> vector<32x128xf32>
    %c0_3 = arith.constant 0 : index
    %c0_4 = arith.constant 0 : index
    %3 = vector.load %arg4[%c0_3, %c0_4] : memref<1x128xf32, #tpu.memory_space<vmem>>, vector<1x128xf32>
    %4 = vector.broadcast %3 : vector<1x128xf32> to vector<32x128xf32>
    %5 = arith.addf %2, %4 : vector<32x128xf32>
    %c0_5 = arith.constant 0 : index
    %c0_6 = arith.constant 0 : index
    %6 = vector.load %arg5[%c0_5, %c0_6] : memref<32x128xf32, #tpu.memory_space<vmem>>, vector<32x128xf32>
    tpu.vector_store %arg5[%c0_5, %c0_6], %5 {strides = array<i32>} : memref<32x128xf32, #tpu.memory_space<vmem>>, vector<32x128xf32>,
    return
  }
  func.func @transform_0(%arg0: i32, %arg1: i32) -> (i32, i32) {
    %c0_i32 = arith.constant 0 : i32
    %c0_i32_0 = arith.constant 0 : i32
    return %arg0, %c0_i32 : i32, i32
  }
  func.func @transform_1(%arg0: i32, %arg1: i32) -> (i32, i32) {
    %c0_i32 = arith.constant 0 : i32
    %c0_i32_0 = arith.constant 0 : i32
    return %c0_i32, %arg1 : i32, i32
  }
  func.func @transform_2(%arg0: i32, %arg1: i32) -> (i32, i32) {
    %c0_i32 = arith.constant 0 : i32
    %c0_i32_0 = arith.constant 0 : i32
    return %c0_i32, %arg1 : i32, i32
  }
  func.func @transform_3(%arg0: i32, %arg1: i32) -> (i32, i32) {
    %c0_i32 = arith.constant 0 : i32
    return %arg0, %arg1 : i32, i32
  }
}

</mosaic_0001>

<llo_original>
// kernel: tpu_custom_call.1
$region0: #{tpu_custom_call.1}
  #allocation0 [shape = 'u32[]', space=smem, size = 0x4, offset = 0x4, fixed_abs, tag = 'smem constant byte address 0x4 - core index']
  #allocation1 [shape = 'u32[144,128]{1,0:T(1,128)}', space=vmem, size = 0x12000, scoped, tag = 'internal scratch']
  %s0 = inlined_call_operand.hbm [shape: bf16[32,45], index: 0, kind: input, shape index: {}]
  %s1 = inlined_call_operand.hbm [shape: bf16[45,128], index: 1, kind: input, shape index: {}]
  %s2 = inlined_call_operand.vmem [shape: f32[1,128], index: 2, kind: input, shape index: {}]
  %s3 = inlined_call_operand.hbm [shape: f32[32,128], index: 3, kind: output, shape index: {}]
  %s4 = sld [smem:[#allocation0]]
  $region30: #{tpu_custom_call.1} parent=0
    _
  %s6 = ssub.s32 1, %s4
  %s7 = scalar_select 0, %s6, %s4
  $region1: #{tpu_custom_call.1} parent=0
    #allocation2 [shape = 'u8[8192]{0}', space=vmem, size = 0x2000, scoped, tag = 'input window, operand 0, single buffered']
    #allocation3 [shape = 's32[1]{0}', space=sflag, size = 0x4, scoped, tag = 'scoped memory for tpu_custom_call.1']
    #allocation4 [shape = 's32[1]{0}', space=sflag, size = 0x4, scoped, tag = 'scoped memory for tpu_custom_call.1']
    #allocation5 [shape = 'u8[12288]{0}', space=vmem, size = 0x3000, scoped, tag = 'input window, operand 1, single buffered']
    #allocation6 [shape = 's32[1]{0}', space=sflag, size = 0x4, scoped, tag = 'scoped memory for tpu_custom_call.1']
    #allocation7 [shape = 'u8[16384]{0}', space=vmem, size = 0x4000, scoped, tag = 'output window, operand 0, single buffered']
    %8 = vsyncpa [#allocation3], 0
    %9 = vsyncpa [#allocation6], 0
    %10 = vsyncpa [#allocation4], 0
    // Predicated region
    $region2: #{tpu_custom_call.1} parent=1 // pred_check
      _
    $region3: #{tpu_custom_call.1} parent=1 // pred_check_branch
      %12 = sbr.rel (0) target = $region5
    $region4: #{tpu_custom_call.1} parent=1 // pred_region
      %s14 = ssub.s32 256, 256
      %15 = vsyncadd [#allocation3], %s14
      %s16 = sshll.u32 [#allocation2], 4
      %s17 = int_to_ptr.vmem [resolvable:$true] %s16
      %22 = dma.hbm_to_vmem [thread:$0]  %s0, 256, %s17, [#allocation3], 64, 64, 4
    $region5: #{tpu_custom_call.1} parent=1 // pred_fallthru
      _
    // Predicated region
    $region6: #{tpu_custom_call.1} parent=1 // pred_check
      _
    $region7: #{tpu_custom_call.1} parent=1 // pred_check_branch
      %24 = sbr.rel (0) target = $region9
    $region8: #{tpu_custom_call.1} parent=1 // pred_region
      %s26 = ssub.s32 384, 384
      %27 = vsyncadd [#allocation6], %s26
      %s28 = sshll.u32 [#allocation5], 4
      %s29 = int_to_ptr.vmem [resolvable:$true] %s28
      %34 = dma.hbm_to_vmem [thread:$0]  %s1, 384, %s29, [#allocation6], 64, 64, 4
    $region9: #{tpu_custom_call.1} parent=1 // pred_fallthru
      _
    // Predicated region
    $region10: #{tpu_custom_call.1} parent=1 // pred_check
      _
    $region11: #{tpu_custom_call.1} parent=1 // pred_check_branch
      %36 = sbr.rel (0) target = $region13
    $region12: #{tpu_custom_call.1} parent=1 // pred_region
      _
    $region13: #{tpu_custom_call.1} parent=1 // pred_fallthru
      _
    // Predicated region
    $region14: #{tpu_custom_call.1} parent=1 // pred_check
      _
    $region15: #{tpu_custom_call.1} parent=1 // pred_check_branch
      %38 = sbr.rel (0) target = $region17
    $region16: #{tpu_custom_call.1} parent=1 // pred_region
      %39 = dma.done [#allocation3], 256
    $region17: #{tpu_custom_call.1} parent=1 // pred_fallthru
      _
    // Predicated region
    $region18: #{tpu_custom_call.1} parent=1 // pred_check
      _
    $region19: #{tpu_custom_call.1} parent=1 // pred_check_branch
      %41 = sbr.rel (0) target = $region21
    $region20: #{tpu_custom_call.1} parent=1 // pred_region
      %42 = dma.done [#allocation6], 384
    $region21: #{tpu_custom_call.1} parent=1 // pred_fallthru
      _
    %v44 = vld [vmem:[#allocation2] sm:$0xf]
    %v45 = vld [vmem:[#allocation2 + $0x4] sm:$0xf]
    %v46 = vld [vmem:[#allocation2 + $0x8] sm:$0xf]
    %v47 = vld [vmem:[#allocation2 + $0xc] sm:$0xf]
    %v48 = vld [vmem:[#allocation5] sm:$0xf]
    %v49 = vld [vmem:[#allocation5 + $0x4] sm:$0xf]
    %v50 = vld [vmem:[#allocation5 + $0x8] sm:$0xf]
    %v51 = vld [vmem:[#allocation5 + $0xc] sm:$0xf]
    %v52 = vld [vmem:[#allocation5 + $0x10] sm:$0xf]
    %v53 = vld [vmem:[#allocation5 + $0x14] sm:$0x7]
    %v54 = vld [vmem:[%s2] sm:$0x1]
    %v56 = vlaneseq
    %v57 = vshrl.u32 %v56, 7
    %v58 = vsub.s32 0, %v57
    %v59 = vrot.slane %v54, %v58
    %v65 = vunpack.c.l.b16 %v44
    %v66 = vunpack.c.l.b16 %v45
    %v67 = vunpack.c.l.b16 %v46
    %v68 = vunpack.c.l.b16 %v47
    %v69 = vpack.c.b16 %v66, %v65
    %v70 = vpack.c.b16 %v68, %v67
    %v77 = vunpack.c.l.b16 %v48
    %v78 = vunpack.c.l.b16 %v49
    %v79 = vunpack.c.l.b16 %v50
    %v80 = vunpack.c.l.b16 %v51
    %v81 = vunpack.c.l.b16 %v52
    %v82 = vunpack.c.l.b16 %v53
    %v83 = vpack.c.b16 %v78, %v77
    %v84 = vpack.c.b16 %v80, %v79
    %v85 = vpack.c.b16 %v82, %v81
    %vm88 = vcmask 367616
    %v90 = vsel %vm88, %v69, 0
    %v93 = vsel %vm88, %v70, 0
    %vm95 = vcmask 1045504
    %vm96 = vcmask 1046528
    %v97 = vsel %vm95, 4294967295, 65535
    %v98 = vsel %vm96, %v97, 0
    %v100 = vand.u32 %v85, %v98
    %102 = vmatprep.subr.bf16.mxu0 0
    %103 = vmatpush1.bf16.msra.mxu0 0
    %104 = vmatprep.subr.bf16.mxu0 0
    %105 = vmatpush1.bf16.msra.mxu0 0
    %106 = vmatprep.subr.bf16.mxu0 0
    %107 = vmatpush1.bf16.msra.mxu0 0
    %108 = vmatprep.subr.bf16.mxu0 0
    %109 = vmatpush1.bf16.msra.mxu0 0
    %110 = vmatprep.subr.bf16.mxu0 0
    %111 = vmatpush1.bf16.msra.mxu0 0
    %112 = vmatprep.subr.bf16.mxu0 0
    %113 = vmatpush1.bf16.msra.mxu0 %v100
    %114 = vmatprep.subr.bf16.mxu0 0
    %115 = vmatpush1.bf16.msra.mxu0 %v84
    %116 = vmatprep.subr.bf16.mxu0 0
    %117 = vmatpush1.bf16.msra.mxu0 %v83
    %118 = vmatprep.subr.bf16.mxu0 0
    %119 = vmatpush2.bf16.msra.mxu0 0
    %120 = vmatprep.subr.bf16.mxu0 0
    %121 = vmatpush2.bf16.msra.mxu0 0
    %122 = vmatprep.subr.bf16.mxu0 0
    %123 = vmatpush2.bf16.msra.mxu0 0
    %124 = vmatprep.subr.bf16.mxu0 0
    %125 = vmatpush2.bf16.msra.mxu0 0
    %126 = vmatprep.subr.bf16.mxu0 0
    %127 = vmatpush2.bf16.msra.mxu0 0
    %128 = vmatprep.subr.bf16.mxu0 0
    %129 = vmatpush2.bf16.msra.mxu0 0
    %130 = vmatprep.subr.bf16.mxu0 0
    %131 = vmatpush2.bf16.msra.mxu0 0
    %132 = vmatprep.subr.bf16.mxu0 0
    %133 = vmatpush2.bf16.msra.mxu0 0
    %134 = vmatprep.mubr.bf16.mxu0 0
    %135 = vmatmul.mubr.bf16.gmra.mxu0 %v90
    %v136 = vpop.f32.mrf.mxu0
    %v137 = vadd.f32 %v59, %v136
    %v138 = vpop.f32.mrf.mxu0
    %v139 = vpop.f32.mrf.mxu0
    %v140 = vadd.f32 %v59, %v139
    %v141 = vpop.f32.mrf.mxu0
    %142 = vmatprep.mubr.bf16.mxu0 0
    %143 = vmatmul.mubr.bf16.gmra.mxu0 %v93
    %v144 = vpop.f32.mrf.mxu0
    %v145 = vadd.f32 %v59, %v144
    %v146 = vpop.f32.mrf.mxu0
    %v147 = vpop.f32.mrf.mxu0
    %v148 = vadd.f32 %v59, %v147
    %v149 = vpop.f32.mrf.mxu0
    %150 = vdwg.mxu0
    %151 = vst [vmem:[#allocation7] sm:$0xff] %v137
    %152 = vst [vmem:[#allocation7 + $0x8] sm:$0xff] %v140
    %153 = vst [vmem:[#allocation7 + $0x10] sm:$0xff] %v145
    %154 = vst [vmem:[#allocation7 + $0x18] sm:$0xff] %v148
    // Predicated region
    $region22: #{tpu_custom_call.1} parent=1 // pred_check
      _
    $region23: #{tpu_custom_call.1} parent=1 // pred_check_branch
      %156 = sbr.rel (0) target = $region25
    $region24: #{tpu_custom_call.1} parent=1 // pred_region
      %s158 = ssub.s32 512, 512
      %159 = vsyncadd [#allocation4], %s158
      %s160 = sshll.u32 [#allocation7], 4
      %s161 = int_to_ptr.vmem [resolvable:$true] %s160
      %166 = dma.vmem_to_hbm [thread:$0]  %s161, 512, %s3, [#allocation4], 128, 128, 8
    $region25: #{tpu_custom_call.1} parent=1 // pred_fallthru
      _
    // Predicated region
    $region26: #{tpu_custom_call.1} parent=1 // pred_check
      _
    $region27: #{tpu_custom_call.1} parent=1 // pred_check_branch
      %168 = sbr.rel (0) target = $region29
    $region28: #{tpu_custom_call.1} parent=1 // pred_region
      %169 = dma.done [#allocation4], 512
    $region29: #{tpu_custom_call.1} parent=1 // pred_fallthru
      _
    %170 = vsyncpa [#allocation3], 1
    %171 = vsyncpa [#allocation6], 1
    %172 = vsyncpa [#allocation4], 1

</llo_original>
